<compile_context>
chip_gen: v5e
topology: v5e:2x2
jax: 0.10.0
libtpu: 0.0.40
codegen_flags: <defaults>
</compile_context>

<pallas_src>
import math

import jax
import jax.numpy as jnp
from jax.experimental import pallas as pl
from jax.experimental.pallas import tpu as pltpu


_INV_SQRT2 = 1.0 / math.sqrt(2.0)
_VMEM_BUDGET = 48 * 2**20          # conservative cap; v7x has 64 MiB physical


def _round_up(x, m):
    return ((x + m - 1) // m) * m


def _pick_chunk(total, target, align):
    """Largest multiple of `align` that divides `total` and is <= target."""
    best = align
    c = align
    while c <= min(target, total):
        if total % c == 0:
            best = c
        c += align
    return best


def _vmem_estimate(tm, th, c_pad, itm_x, itm_w):
    """Double-buffered pipelined tiles + resident f32 accumulator (bytes)."""
    pipelined = (tm * c_pad * itm_x        # x row-tile
                 + c_pad * th * itm_w      # W1 H-chunk
                 + th * itm_w              # b1 H-chunk
                 + th * c_pad * itm_w      # W2 H-chunk
                 + c_pad * itm_w           # b2 (resident)
                 + tm * c_pad * itm_x)     # out tile
    return 2 * pipelined + tm * c_pad * 4


def mlp_kernel(x_ref, w1_ref, b1_ref, w2_ref, b2_ref, o_ref, acc_ref):
    """One (tm, C_pad) row-tile x one H-chunk of the fused MLP.

    Grid = (M tiles [parallel], H chunks [arbitrary / reduction]).
    acc_ref is a (tm, C_pad) f32 accumulator resident across the H axis.
    """
    h_idx = pl.program_id(1)

    @pl.when(h_idx == 0)
    def _init():
        # Fold the c_proj bias into the accumulator init.
        acc_ref[...] = jnp.broadcast_to(
            b2_ref[...].astype(jnp.float32), acc_ref.shape)

    # c_fc chunk: (tm, C_pad) @ (C_pad, th) -> (tm, th) on the MXU, f32 acc.
    h = jnp.dot(x_ref[...], w1_ref[...], preferred_element_type=jnp.float32)
    h = h + b1_ref[...].astype(jnp.float32)

    # Exact erf-based GELU (PyTorch nn.GELU() default); erf goes to the EUP.
    h = 0.5 * h * (1.0 + jax.lax.erf(h * jnp.float32(_INV_SQRT2)))

    # c_proj chunk: (tm, th) @ (th, C_pad) accumulated into the f32 scratch.
    acc_ref[...] += jnp.dot(h.astype(w2_ref.dtype), w2_ref[...],
                            preferred_element_type=jnp.float32)

    @pl.when(h_idx == pl.num_programs(1) - 1)
    def _finalize():
        # dropout: identity (eval mode / p = 0.0)
        o_ref[...] = acc_ref[...].astype(o_ref.dtype)


def mlp_pallas(x, w_fc, b_fc, w_proj, b_proj, *, tm_target=512, th_target=512):
    """
    Fused nanoGPT MLP forward.

    x       : (B, T, C)
    w_fc    : (C, 4C)   (transposed vs torch nn.Linear weight)
    b_fc    : (4C,)
    w_proj  : (4C, C)   (transposed vs torch nn.Linear weight)
    b_proj  : (C,)
    Weights may be bf16 (recommended for bandwidth) or f32; accumulation is f32.
    returns : (B, T, C) in x.dtype
    """
    B, T, C = x.shape
    H = w_fc.shape[1]
    M = B * T

    # ---- lane/sublane-aligned padded sizes --------------------------------
    C_pad = _round_up(C, 128)                 # lane-dense contraction + output
    H_pad = _round_up(H, 128)
    sub = 16 if x.dtype == jnp.bfloat16 else 8
    tm = _round_up(min(tm_target, _round_up(M, sub)), sub)
    th = _pick_chunk(H_pad, th_target, 128)   # H reduction chunk

    # ---- shrink tiles until the working set fits the VMEM budget ----------
    itm_x = x.dtype.itemsize
    itm_w = w_fc.dtype.itemsize
    while (_vmem_estimate(tm, th, C_pad, itm_x, itm_w) > _VMEM_BUDGET
           and tm > sub):
        tm = _round_up(tm // 2, sub)
    while (_vmem_estimate(tm, th, C_pad, itm_x, itm_w) > _VMEM_BUDGET
           and th > 128):
        th = _pick_chunk(H_pad, th // 2, 128)

    M_pad = _round_up(M, tm)                  # cdiv-style: no dropped rows

    # ---- zero-pad operands (zeros are exact no-ops through the matmuls) ---
    x2d = jnp.pad(x.reshape(M, C), ((0, M_pad - M), (0, C_pad - C)))
    w1 = jnp.pad(w_fc, ((0, C_pad - C), (0, H_pad - H)))
    b1 = jnp.pad(b_fc, (0, H_pad - H)).reshape(1, H_pad)
    w2 = jnp.pad(w_proj, ((0, H_pad - H), (0, C_pad - C)))
    b2 = jnp.pad(b_proj, (0, C_pad - C)).reshape(1, C_pad)

    grid = (M_pad // tm, H_pad // th)

    vmem_bytes = _vmem_estimate(tm, th, C_pad, itm_x, itm_w)
    vmem_limit = int(min(max(2 * vmem_bytes, 32 * 2**20), 60 * 2**20))

    out2d = pl.pallas_call(
        mlp_kernel,
        out_shape=jax.ShapeDtypeStruct((M_pad, C_pad), x.dtype),
        grid_spec=pltpu.PrefetchScalarGridSpec(
            num_scalar_prefetch=0,
            grid=grid,
            in_specs=[
                pl.BlockSpec((tm, C_pad), lambda i, h: (i, 0)),   # x row-tile
                pl.BlockSpec((C_pad, th), lambda i, h: (0, h)),   # W1 chunk
                pl.BlockSpec((1, th),     lambda i, h: (0, h)),   # b1 chunk
                pl.BlockSpec((th, C_pad), lambda i, h: (h, 0)),   # W2 chunk
                pl.BlockSpec((1, C_pad),  lambda i, h: (0, 0)),   # b2 resident
            ],
            out_specs=pl.BlockSpec((tm, C_pad), lambda i, h: (i, 0)),
            scratch_shapes=[pltpu.VMEM((tm, C_pad), jnp.float32)],
        ),
        compiler_params=pltpu.CompilerParams(
            dimension_semantics=("parallel", "arbitrary"),
            vmem_limit_bytes=vmem_limit,
        ),
    )(x2d, w1, b1, w2, b2)

    return out2d[:M, :C].reshape(B, T, C)


if __name__ == "__main__":
    # config: n_embd=32, bias=True, dropout=0.0 ; batch=2, seq=8
    B, T, C = 2, 8, 32
    H = 4 * C

    key = jax.random.PRNGKey(0)
    kx, kw1, kb1, kw2, kb2 = jax.random.split(key, 5)

    x = jax.random.normal(kx, (B, T, C), dtype=jnp.float32)

    # deterministic parameter init (torch Linear-style uniform bounds)
    bound1 = 1.0 / math.sqrt(C)
    bound2 = 1.0 / math.sqrt(H)
    w_fc = jax.random.uniform(kw1, (C, H), jnp.float32, -bound1, bound1)
    b_fc = jax.random.uniform(kb1, (H,), jnp.float32, -bound1, bound1)
    w_proj = jax.random.uniform(kw2, (H, C), jnp.float32, -bound2, bound2)
    b_proj = jax.random.uniform(kb2, (C,), jnp.float32, -bound2, bound2)

    out = jax.jit(mlp_pallas)(x, w_fc, b_fc, w_proj, b_proj)
    jax.block_until_ready(out)

    # reference check in plain JAX (exact-erf GELU, dropout identity)
    h_ref = x.reshape(-1, C) @ w_fc + b_fc
    h_ref = 0.5 * h_ref * (1.0 + jax.lax.erf(h_ref / jnp.sqrt(2.0)))
    ref = (h_ref @ w_proj + b_proj).reshape(B, T, C)
    assert out.shape == ref.shape
    assert jnp.allclose(out, ref, atol=1e-5, rtol=1e-5), "mismatch vs reference"

    print("KERNEL_OK")
</pallas_src>

<mosaic_0001>
module attributes {stable_mosaic.version = 11 : i64} {
  func.func @mlp_kernel(%arg0: i32, %arg1: i32, %arg2: memref<16x128xf32, #tpu.memory_space<vmem>>, %arg3: memref<128x128xf32, #tpu.memory_space<vmem>>, %arg4: memref<1x128xf32, #tpu.memory_space<vmem>>, %arg5: memref<128x128xf32, #tpu.memory_space<vmem>>, %arg6: memref<1x128xf32, #tpu.memory_space<vmem>>, %arg7: memref<16x128xf32, #tpu.memory_space<vmem>>, %arg8: memref<16x128xf32, #tpu.memory_space<vmem>>) attributes {dimension_semantics = [#tpu.dimension_semantics<parallel>, #tpu.dimension_semantics<arbitrary>], iteration_bounds = array<i64: 1, 1>, scalar_prefetch = 0 : i64, scratch_operands = 1 : i64, tpu.core_type = #tpu.core_type<tc>, window_params = [{transform_indices = @transform_0, window_bounds = array<i64: 16, 128>}, {transform_indices = @transform_1, window_bounds = array<i64: 128, 128>}, {transform_indices = @transform_2, window_bounds = array<i64: 1, 128>}, {transform_indices = @transform_3, window_bounds = array<i64: 128, 128>}, {pipeline_mode = #tpu.pipeline_mode<synchronous>, transform_indices = @transform_4, window_bounds = array<i64: 1, 128>}, {transform_indices = @transform_5, window_bounds = array<i64: 16, 128>}]} {
    %c0_i32 = arith.constant 0 : i32
    %0 = arith.cmpi eq, %arg1, %c0_i32 : i32
    %1 = arith.extui %0 : i1 to i32
    %c0_i32_0 = arith.constant 0 : i32
    %2 = arith.cmpi ne, %1, %c0_i32_0 : i32
    scf.if %2 {
      %c0_18 = arith.constant 0 : index
      %c0_19 = arith.constant 0 : index
      %25 = vector.load %arg6[%c0_18, %c0_19] : memref<1x128xf32, #tpu.memory_space<vmem>>, vector<1x128xf32>
      %26 = vector.shape_cast %25 : vector<1x128xf32> to vector<1x128xf32>
      %27 = vector.broadcast %26 : vector<1x128xf32> to vector<16x128xf32>
      %c0_20 = arith.constant 0 : index
      %c0_21 = arith.constant 0 : index
      %28 = vector.load %arg8[%c0_20, %c0_21] : memref<16x128xf32, #tpu.memory_space<vmem>>, vector<16x128xf32>
      tpu.vector_store %arg8[%c0_20, %c0_21], %27 {strides = array<i32>} : memref<16x128xf32, #tpu.memory_space<vmem>>, vector<16x128xf32>,
    } else {
    }
    %c0 = arith.constant 0 : index
    %c0_1 = arith.constant 0 : index
    %3 = vector.load %arg2[%c0, %c0_1] : memref<16x128xf32, #tpu.memory_space<vmem>>, vector<16x128xf32>
    %c0_2 = arith.constant 0 : index
    %c0_3 = arith.constant 0 : index
    %4 = vector.load %arg3[%c0_2, %c0_3] : memref<128x128xf32, #tpu.memory_space<vmem>>, vector<128x128xf32>
    %cst = arith.constant dense<0.000000e+00> : vector<16x128xf32>
    %5 = tpu.matmul %3, %4, %cst {dimension_numbers = #tpu.dot_dimension_numbers<[1], [0], [0], [1], [0, 0, 1, 1], [], []>} : vector<16x128xf32>, vector<128x128xf32>, vector<16x128xf32> -> vector<16x128xf32>
    %c0_4 = arith.constant 0 : index
    %c0_5 = arith.constant 0 : index
    %6 = vector.load %arg4[%c0_4, %c0_5] : memref<1x128xf32, #tpu.memory_space<vmem>>, vector<1x128xf32>
    %7 = vector.broadcast %6 : vector<1x128xf32> to vector<16x128xf32>
    %8 = arith.addf %5, %7 : vector<16x128xf32>
    %cst_6 = arith.constant 5.000000e-01 : f32
    %9 = vector.broadcast %cst_6 : f32 to vector<16x128xf32>
    %10 = arith.mulf %9, %8 : vector<16x128xf32>
    %cst_7 = arith.constant 0.707106769 : f32
    %11 = vector.broadcast %cst_7 : f32 to vector<16x128xf32>
    %12 = arith.mulf %8, %11 : vector<16x128xf32>
    %13 = math.erf %12 : vector<16x128xf32>
    %cst_8 = arith.constant 1.000000e+00 : f32
    %14 = vector.broadcast %cst_8 : f32 to vector<16x128xf32>
    %15 = arith.addf %14, %13 : vector<16x128xf32>
    %16 = arith.mulf %10, %15 : vector<16x128xf32>
    %c0_9 = arith.constant 0 : index
    %c0_10 = arith.constant 0 : index
    %17 = vector.load %arg8[%c0_9, %c0_10] : memref<16x128xf32, #tpu.memory_space<vmem>>, vector<16x128xf32>
    %c0_11 = arith.constant 0 : index
    %c0_12 = arith.constant 0 : index
    %18 = vector.load %arg5[%c0_11, %c0_12] : memref<128x128xf32, #tpu.memory_space<vmem>>, vector<128x128xf32>
    %cst_13 = arith.constant dense<0.000000e+00> : vector<16x128xf32>
    %19 = tpu.matmul %16, %18, %cst_13 {dimension_numbers = #tpu.dot_dimension_numbers<[1], [0], [0], [1], [0, 0, 1, 1], [], []>} : vector<16x128xf32>, vector<128x128xf32>, vector<16x128xf32> -> vector<16x128xf32>
    %20 = arith.addf %17, %19 : vector<16x128xf32>
    %c0_14 = arith.constant 0 : index
    %c0_15 = arith.constant 0 : index
    %21 = vector.load %arg8[%c0_14, %c0_15] : memref<16x128xf32, #tpu.memory_space<vmem>>, vector<16x128xf32>
    tpu.vector_store %arg8[%c0_14, %c0_15], %20 {strides = array<i32>} : memref<16x128xf32, #tpu.memory_space<vmem>>, vector<16x128xf32>,
    %c0_i32_16 = arith.constant 0 : i32
    %22 = arith.cmpi eq, %arg1, %c0_i32_16 : i32
    %23 = arith.extui %22 : i1 to i32
    %c0_i32_17 = arith.constant 0 : i32
    %24 = arith.cmpi ne, %23, %c0_i32_17 : i32
    scf.if %24 {
      %c0_18 = arith.constant 0 : index
      %c0_19 = arith.constant 0 : index
      %25 = vector.load %arg8[%c0_18, %c0_19] : memref<16x128xf32, #tpu.memory_space<vmem>>, vector<16x128xf32>
      %c0_20 = arith.constant 0 : index
      %c0_21 = arith.constant 0 : index
      %26 = vector.load %arg7[%c0_20, %c0_21] : memref<16x128xf32, #tpu.memory_space<vmem>>, vector<16x128xf32>
      tpu.vector_store %arg7[%c0_20, %c0_21], %25 {strides = array<i32>} : memref<16x128xf32, #tpu.memory_space<vmem>>, vector<16x128xf32>,
    } else {
    }
    return
  }
  func.func @transform_0(%arg0: i32, %arg1: i32) -> (i32, i32) {
    %c0_i32 = arith.constant 0 : i32
    %c0_i32_0 = arith.constant 0 : i32
    return %arg0, %c0_i32 : i32, i32
  }
  func.func @transform_1(%arg0: i32, %arg1: i32) -> (i32, i32) {
    %c0_i32 = arith.constant 0 : i32
    %c0_i32_0 = arith.constant 0 : i32
    return %c0_i32, %arg1 : i32, i32
  }
  func.func @transform_2(%arg0: i32, %arg1: i32) -> (i32, i32) {
    %c0_i32 = arith.constant 0 : i32
    %c0_i32_0 = arith.constant 0 : i32
    return %c0_i32, %arg1 : i32, i32
  }
  func.func @transform_3(%arg0: i32, %arg1: i32) -> (i32, i32) {
    %c0_i32 = arith.constant 0 : i32
    %c0_i32_0 = arith.constant 0 : i32
    return %arg1, %c0_i32 : i32, i32
  }
  func.func @transform_4(%arg0: i32, %arg1: i32) -> (i32, i32) {
    %c0_i32 = arith.constant 0 : i32
    %c0_i32_0 = arith.constant 0 : i32
    %c0_i32_1 = arith.constant 0 : i32
    return %c0_i32, %c0_i32_0 : i32, i32
  }
  func.func @transform_5(%arg0: i32, %arg1: i32) -> (i32, i32) {
    %c0_i32 = arith.constant 0 : i32
    %c0_i32_0 = arith.constant 0 : i32
    return %arg0, %c0_i32 : i32, i32
  }
}

</mosaic_0001>

<llo_original>
// kernel: mlp_pallas.1
$region0: #{mlp_pallas.1}
  #allocation0 [shape = 'u32[]', space=smem, size = 0x4, offset = 0x4, fixed_abs, tag = 'smem constant byte address 0x4 - core index']
  #allocation1 [shape = 'u32[72,128]{1,0:T(1,128)}', space=vmem, size = 0x9000, scoped, tag = 'internal scratch']
  #allocation2 [shape = 'f32[16,128]{1,0:T(8,128)}', space=vmem, size = 0x2000, scoped, tag = 'scratch operand']
  %s0 = inlined_call_operand.vmem [shape: f32[16,128], index: 0, kind: input, shape index: {}]
  %s1 = inlined_call_operand.vmem [shape: f32[128,128], index: 1, kind: input, shape index: {}]
  %s2 = inlined_call_operand.vmem [shape: f32[1,128], index: 2, kind: input, shape index: {}]
  %s3 = inlined_call_operand.vmem [shape: f32[128,128], index: 3, kind: input, shape index: {}]
  %s4 = inlined_call_operand.vmem [shape: f32[1,128], index: 4, kind: input, shape index: {}]
  %s5 = inlined_call_operand.vmem [shape: f32[16,128], index: 5, kind: output, shape index: {}]
  %s6 = sld [smem:[#allocation0]]
  $region38: #{mlp_pallas.1} parent=0
    _
  %s8 = ssub.s32 1, %s6
  %s9 = scalar_select 0, %s8, %s6
  // Predicated region
  $region2: #{mlp_pallas.1} parent=0 // pred_check
    _
  $region3: #{mlp_pallas.1} parent=0 // pred_check_branch
    %11 = sbr.rel (0) target = $region5
  $region4: #{mlp_pallas.1} parent=0 // pred_region
    _
  $region5: #{mlp_pallas.1} parent=0 // pred_fallthru
    _
  // Predicated region
  $region6: #{mlp_pallas.1} parent=0 // pred_check
    _
  $region7: #{mlp_pallas.1} parent=0 // pred_check_branch
    %13 = sbr.rel (0) target = $region9
  $region8: #{mlp_pallas.1} parent=0 // pred_region
    _
  $region9: #{mlp_pallas.1} parent=0 // pred_fallthru
    _
  // Predicated region
  $region10: #{mlp_pallas.1} parent=0 // pred_check
    _
  $region11: #{mlp_pallas.1} parent=0 // pred_check_branch
    %15 = sbr.rel (0) target = $region13
  $region12: #{mlp_pallas.1} parent=0 // pred_region
    _
  $region13: #{mlp_pallas.1} parent=0 // pred_fallthru
    _
  // Predicated region
  $region14: #{mlp_pallas.1} parent=0 // pred_check
    _
  $region15: #{mlp_pallas.1} parent=0 // pred_check_branch
    %17 = sbr.rel (0) target = $region17
  $region16: #{mlp_pallas.1} parent=0 // pred_region
    _
  $region17: #{mlp_pallas.1} parent=0 // pred_fallthru
    _
  // Predicated region
  $region18: #{mlp_pallas.1} parent=0 // pred_check
    _
  $region19: #{mlp_pallas.1} parent=0 // pred_check_branch
    %19 = sbr.rel (0) target = $region21
  $region20: #{mlp_pallas.1} parent=0 // pred_region
    _
  $region21: #{mlp_pallas.1} parent=0 // pred_fallthru
    _
  %p20 = scmp.eq.s32.totalorder 0, 0
  // Predicated region
  $region22: #{mlp_pallas.1} parent=0 // pred_check
    %p21 = pneg %p20
  $region23: #{mlp_pallas.1} parent=0 // pred_check_branch
    %23 = sbr.rel (%p21) target = $region25
  $region24: #{mlp_pallas.1} parent=0 // pred_region
    %v24 = vld [vmem:[%s4] sm:$0x1]
    %v26 = vperm.slane %v24, 0
    %28 = vst [vmem:[#allocation2] sm:$0xff] %v26
    %29 = vst [vmem:[#allocation2 + $0x8] sm:$0xff] %v26
  $region25: #{mlp_pallas.1} parent=0 // pred_fallthru
    _
  %v30 = vld [vmem:[%s0] sm:$0xff]
  %v31 = vld [vmem:[%s0 + $0x8] sm:$0xff]
  %v32 = vld [vmem:[%s1] sm:$0xff]
  %v33 = vld [vmem:[%s1 + $0x8] sm:$0xff]
  %v34 = vld [vmem:[%s1 + $0x10] sm:$0xff]
  %v35 = vld [vmem:[%s1 + $0x18] sm:$0xff]
  %v36 = vld [vmem:[%s1 + $0x20] sm:$0xff]
  %v37 = vld [vmem:[%s1 + $0x28] sm:$0xff]
  %v38 = vld [vmem:[%s1 + $0x30] sm:$0xff]
  %v39 = vld [vmem:[%s1 + $0x38] sm:$0xff]
  %v40 = vld [vmem:[%s1 + $0x40] sm:$0xff]
  %v41 = vld [vmem:[%s1 + $0x48] sm:$0xff]
  %v42 = vld [vmem:[%s1 + $0x50] sm:$0xff]
  %v43 = vld [vmem:[%s1 + $0x58] sm:$0xff]
  %v44 = vld [vmem:[%s1 + $0x60] sm:$0xff]
  %v45 = vld [vmem:[%s1 + $0x68] sm:$0xff]
  %v46 = vld [vmem:[%s1 + $0x70] sm:$0xff]
  %v47 = vld [vmem:[%s1 + $0x78] sm:$0xff]
  %v48 = vld [vmem:[%s2] sm:$0x1]
  %v50 = vperm.slane %v48, 0
  %52 = vmatpush.msra.mxu0 %v47
  %53 = vmatpush.msra.mxu0 %v46
  %54 = vmatpush.msra.mxu0 %v45
  %55 = vmatpush.msra.mxu0 %v44
  %56 = vmatpush.msra.mxu0 %v43
  %57 = vmatpush.msra.mxu0 %v42
  %58 = vmatpush.msra.mxu0 %v41
  %59 = vmatpush.msra.mxu0 %v40
  %60 = vmatpush.msra.mxu0 %v39
  %61 = vmatpush.msra.mxu0 %v38
  %62 = vmatpush.msra.mxu0 %v37
  %63 = vmatpush.msra.mxu0 %v36
  %64 = vmatpush.msra.mxu0 %v35
  %65 = vmatpush.msra.mxu0 %v34
  %66 = vmatpush.msra.mxu0 %v33
  %67 = vmatpush.msra.mxu0 %v32
  %68 = vmatmul.f32.gmra.mxu0 %v30
  %v69 = vpop.f32.mrf.mxu0
  %v70 = vadd.f32 %v50, %v69
  %71 = vmatmul.f32.gmra.mxu0 %v31
  %v72 = vpop.f32.mrf.mxu0
  %v73 = vadd.f32 %v50, %v72
  %74 = vdwg.mxu0
  %v75 = vmul.f32 %v70, 0.5
  %v76 = vmul.f32 %v73, 0.5
  %v77 = vmul.f32 %v70, 0.70710677
  %v78 = vmul.f32 %v73, 0.70710677
  %v79 = vmul.f32 %v77, %v77
  %v80 = vmin.f32 16.0, %v79
  %v81 = vmul.f32 %v80, 2.1237322e-06
  %v82 = vadd.f32 %v81, 0.00028619796
  %v83 = vmul.f32 %v80, %v82
  %v84 = vadd.f32 %v83, 0.0036580483
  %v85 = vmul.f32 %v80, %v84
  %v86 = vadd.f32 %v85, 0.05243302
  %v87 = vmul.f32 %v80, %v86
  %v88 = vadd.f32 %v87, 0.18741608
  %v89 = vmul.f32 %v80, %v88
  %v90 = vadd.f32 %v89, 1.1283791
  %v91 = vmul.f32 %v77, %v90
  %v92 = vmul.f32 %v80, 3.8918573e-05
  %v93 = vadd.f32 %v92, 0.001143296
  %v94 = vmul.f32 %v80, %v93
  %v95 = vadd.f32 %v94, 0.014752088
  %v96 = vmul.f32 %v80, %v95
  %v97 = vadd.f32 %v96, 0.112945676
  %v98 = vmul.f32 %v80, %v97
  %v99 = vadd.f32 %v98, 0.4994258
  %v100 = vmul.f32 %v80, %v99
  %v101 = vadd.f32 %v100, 1.0
  %v102 = vrcp.pop %v101
  %v103 = vmul.f32 %v101, %v102
  %v104 = vsub.f32 1.0, %v103
  %v105 = vmul.f32 %v102, %v104
  %v106 = vadd.f32 %v102, %v105
  %vm107 = vweird.f32 %v101
  %vm108 = vweird.f32 %v102
  %vm109 = vmor %vm107, %vm108
  %v110 = vsel %vm109, %v102, %v106
  %v111 = vand.u32 2147483647, %v101
  %vm112 = vcmp.eq.f32.partialorder %v111, 8.507059e+37
  %v113 = vand.u32 %v101, 2147483648
  %v114 = vor.u32 1.1754944e-38, %v113
  %v115 = vsel %vm112, %v114, %v110
  %v116 = vmul.f32 %v91, %v115
  %v117 = vmin.f32 %v116, 1.0
  %v118 = vmax.f32 %v117, -1.0
  %v119 = vmul.f32 %v78, %v78
  %v120 = vmin.f32 16.0, %v119
  %v121 = vmul.f32 %v120, 2.1237322e-06
  %v122 = vadd.f32 %v121, 0.00028619796
  %v123 = vmul.f32 %v120, %v122
  %v124 = vadd.f32 %v123, 0.0036580483
  %v125 = vmul.f32 %v120, %v124
  %v126 = vadd.f32 %v125, 0.05243302
  %v127 = vmul.f32 %v120, %v126
  %v128 = vadd.f32 %v127, 0.18741608
  %v129 = vmul.f32 %v120, %v128
  %v130 = vadd.f32 %v129, 1.1283791
  %v131 = vmul.f32 %v78, %v130
  %v132 = vmul.f32 %v120, 3.8918573e-05
  %v133 = vadd.f32 %v132, 0.001143296
  %v134 = vmul.f32 %v120, %v133
  %v135 = vadd.f32 %v134, 0.014752088
  %v136 = vmul.f32 %v120, %v135
  %v137 = vadd.f32 %v136, 0.112945676
  %v138 = vmul.f32 %v120, %v137
  %v139 = vadd.f32 %v138, 0.4994258
  %v140 = vmul.f32 %v120, %v139
  %v141 = vadd.f32 %v140, 1.0
  %v142 = vrcp.pop %v141
  %v143 = vmul.f32 %v141, %v142
  %v144 = vsub.f32 1.0, %v143
  %v145 = vmul.f32 %v142, %v144
  %v146 = vadd.f32 %v142, %v145
  %vm147 = vweird.f32 %v141
  %vm148 = vweird.f32 %v142
  %vm149 = vmor %vm147, %vm148
  %v150 = vsel %vm149, %v142, %v146
  %v151 = vand.u32 2147483647, %v141
  %vm152 = vcmp.eq.f32.partialorder %v151, 8.507059e+37
  %v153 = vand.u32 %v141, 2147483648
  %v154 = vor.u32 1.1754944e-38, %v153
  %v155 = vsel %vm152, %v154, %v150
  %v156 = vmul.f32 %v131, %v155
  %v157 = vmin.f32 %v156, 1.0
  %v158 = vmax.f32 %v157, -1.0
  %v159 = vadd.f32 %v118, 1.0
  %v160 = vadd.f32 %v158, 1.0
  %v161 = vmul.f32 %v75, %v159
  %v162 = vmul.f32 %v76, %v160
  %v163 = vld [vmem:[#allocation2] sm:$0xff]
  %v164 = vld [vmem:[#allocation2 + $0x8] sm:$0xff]
  %v165 = vld [vmem:[%s3] sm:$0xff]
  %v166 = vld [vmem:[%s3 + $0x8] sm:$0xff]
  %v167 = vld [vmem:[%s3 + $0x10] sm:$0xff]
  %v168 = vld [vmem:[%s3 + $0x18] sm:$0xff]
  %v169 = vld [vmem:[%s3 + $0x20] sm:$0xff]
  %v170 = vld [vmem:[%s3 + $0x28] sm:$0xff]
  %v171 = vld [vmem:[%s3 + $0x30] sm:$0xff]
  %v172 = vld [vmem:[%s3 + $0x38] sm:$0xff]
  %v173 = vld [vmem:[%s3 + $0x40] sm:$0xff]
  %v174 = vld [vmem:[%s3 + $0x48] sm:$0xff]
  %v175 = vld [vmem:[%s3 + $0x50] sm:$0xff]
  %v176 = vld [vmem:[%s3 + $0x58] sm:$0xff]
  %v177 = vld [vmem:[%s3 + $0x60] sm:$0xff]
  %v178 = vld [vmem:[%s3 + $0x68] sm:$0xff]
  %v179 = vld [vmem:[%s3 + $0x70] sm:$0xff]
  %v180 = vld [vmem:[%s3 + $0x78] sm:$0xff]
  %181 = vmatpush.msra.mxu0 %v180
  %182 = vmatpush.msra.mxu0 %v179
  %183 = vmatpush.msra.mxu0 %v178
  %184 = vmatpush.msra.mxu0 %v177
  %185 = vmatpush.msra.mxu0 %v176
  %186 = vmatpush.msra.mxu0 %v175
  %187 = vmatpush.msra.mxu0 %v174
  %188 = vmatpush.msra.mxu0 %v173
  %189 = vmatpush.msra.mxu0 %v172
  %190 = vmatpush.msra.mxu0 %v171
  %191 = vmatpush.msra.mxu0 %v170
  %192 = vmatpush.msra.mxu0 %v169
  %193 = vmatpush.msra.mxu0 %v168
  %194 = vmatpush.msra.mxu0 %v167
  %195 = vmatpush.msra.mxu0 %v166
  %196 = vmatpush.msra.mxu0 %v165
  %197 = vmatmul.f32.gmra.mxu0 %v161
  %v198 = vpop.f32.mrf.mxu0
  %v199 = vadd.f32 0.0, %v198
  %200 = vmatmul.f32.gmra.mxu0 %v162
  %v201 = vpop.f32.mrf.mxu0
  %v202 = vadd.f32 0.0, %v201
  %203 = vdwg.mxu0
  %v204 = vadd.f32 %v163, %v199
  %v205 = vadd.f32 %v164, %v202
  %206 = vst [vmem:[#allocation2] sm:$0xff] %v204
  %207 = vst [vmem:[#allocation2 + $0x8] sm:$0xff] %v205
  // Predicated region
  $region26: #{mlp_pallas.1} parent=0 // pred_check
    %p208 = pneg %p20
  $region27: #{mlp_pallas.1} parent=0 // pred_check_branch
    %210 = sbr.rel (%p208) target = $region29
  $region28: #{mlp_pallas.1} parent=0 // pred_region
    %v211 = vld [vmem:[#allocation2] sm:$0xff]
    %v212 = vld [vmem:[#allocation2 + $0x8] sm:$0xff]
    %213 = vst [vmem:[%s5] sm:$0xff] %v211
    %214 = vst [vmem:[%s5 + $0x8] sm:$0xff] %v212
  $region29: #{mlp_pallas.1} parent=0 // pred_fallthru
    _
  // Predicated region
  $region30: #{mlp_pallas.1} parent=0 // pred_check
    _
  $region31: #{mlp_pallas.1} parent=0 // pred_check_branch
    %216 = sbr.rel (0) target = $region33
  $region32: #{mlp_pallas.1} parent=0 // pred_region
    _
  $region33: #{mlp_pallas.1} parent=0 // pred_fallthru
    _
  // Predicated region
  $region34: #{mlp_pallas.1} parent=0 // pred_check
    _
  $region35: #{mlp_pallas.1} parent=0 // pred_check_branch
    %218 = sbr.rel (0) target = $region37
  $region36: #{mlp_pallas.1} parent=0 // pred_region
    _
  $region37: #{mlp_pallas.1} parent=0 // pred_fallthru
    _

</llo_original>
